<compile_context>
chip_gen: v7x
topology: tpu7x:2x2x1
jax: 0.10.0
libtpu: 0.0.40
codegen_flags: <defaults>
</compile_context>

<pallas_src>
import functools
import math

import jax
import jax.numpy as jnp
from jax.experimental import pallas as pl
from jax.experimental.pallas import tpu as pltpu


# -----------------------------------------------------------------------------
# helpers
# -----------------------------------------------------------------------------
def _row_tile(n):
    """Largest row tile that evenly divides n (big blocks, bounded VMEM)."""
    if n <= 512:
        return n
    for t in (512, 256, 128, 64, 32, 16, 8):
        if n % t == 0:
            return t
    return n


def _default_vmem_limit():
    """~75% of physical VMEM, capped at 100 MiB (v5e/v6e ~96-100 MiB, v7x ~48 MiB)."""
    cap = 128 * 1024 * 1024
    try:
        cap = int(getattr(pltpu.get_tpu_info(), "vmem_capacity_bytes", cap))
    except Exception:
        pass
    return int(min(100 * 1024 * 1024, (cap * 3) // 4))


def _relative_shift_in_kernel(pos_score):
    """Exact Transformer-XL relative shift of a (T, T) block, fully in VMEM.

    A single strided XLU lane roll gives rolled[i, j] = pos[i, (j - i - 1) mod T];
    the "next row" view is one sublane roll; selection uses iota masks.
    """
    T = pos_score.shape[0]
    row = jax.lax.broadcasted_iota(jnp.int32, (T, T), 0)
    col = jax.lax.broadcasted_iota(jnp.int32, (T, T), 1)
    rolled = pltpu.roll(pos_score, shift=1, axis=1, stride=1, stride_axis=0)
    rolled_next = pltpu.roll(rolled, shift=T - 1, axis=0)        # == rolled[i+1, :]
    return jnp.where(col <= row, rolled,
                     jnp.where(col == row + 1, jnp.float32(0.0), rolled_next))


# -----------------------------------------------------------------------------
# Kernel 1: per-head projection with a resident weight
#           out[b, h, t, :] = x[b, t, :] @ W[h*dh:(h+1)*dh, :]^T + b[h]
# -----------------------------------------------------------------------------
def _proj_kernel(x_ref, w_ref, b_ref, o_ref, *, num_heads, compute_dtype):
    dh = o_ref.shape[-1]
    x = x_ref[...]                                    # (tt, Din)
    if compute_dtype != jnp.float32:
        x = x.astype(compute_dtype)
    for h in range(num_heads):                        # static loop; weight stays in VMEM
        w = w_ref[h * dh:(h + 1) * dh, :]             # (dh, Din) static sublane slice
        if compute_dtype != jnp.float32:
            w = w.astype(compute_dtype)
        y = jax.lax.dot_general(x, w, (((1,), (1,)), ((), ())),
                                preferred_element_type=jnp.float32)
        o_ref[h] = y + b_ref[h:h + 1, :]              # (tt, dh) + (1, dh)


def project_heads(x, w, b, num_heads, *, compute_dtype=jnp.bfloat16):
    """x: (B, T, Din); w: (Dout, Din) torch layout; b: (Dout,) or None.

    Returns head-major (B, num_heads, T, dh) float32.  The full weight is kept
    resident in VMEM (constant index_map -> fetched once per core).
    """
    B, T, Din = x.shape
    Dout = w.shape[0]
    dh = Dout // num_heads
    if b is None:
        b = jnp.zeros((Dout,), jnp.float32)
    b2 = b.reshape(num_heads, dh)
    tt = _row_tile(T)

    return pl.pallas_call(
        functools.partial(_proj_kernel, num_heads=num_heads,
                          compute_dtype=compute_dtype),
        grid=(B, T // tt),
        in_specs=[
            pl.BlockSpec((None, tt, Din), lambda b_, t: (b_, t, 0)),
            pl.BlockSpec((Dout, Din), lambda b_, t: (0, 0)),       # resident weight
            pl.BlockSpec((num_heads, dh), lambda b_, t: (0, 0)),   # resident bias
        ],
        out_specs=pl.BlockSpec((None, num_heads, tt, dh), lambda b_, t: (b_, 0, t, 0)),
        out_shape=jax.ShapeDtypeStruct((B, num_heads, T, dh), jnp.float32),
        compiler_params=pltpu.CompilerParams(
            dimension_semantics=("parallel", "parallel"),
            vmem_limit_bytes=_default_vmem_limit()),
    )(x, w, b2)


# -----------------------------------------------------------------------------
# Kernel 2: fused attention for one (batch, head)
#           scores + relative shift + mask + softmax + context, all in VMEM
# -----------------------------------------------------------------------------
def _attn_kernel(*refs, scale, compute_dtype, has_mask, has_attn):
    q_ref, k_ref, p_ref, v_ref, u_ref, vb_ref = refs[:6]
    idx = 6
    mask_ref = None
    if has_mask:
        mask_ref = refs[idx]
        idx += 1
    ctx_ref = refs[idx]
    attn_ref = refs[idx + 1] if has_attn else None

    q = q_ref[...]                                    # (T, dh)
    k = k_ref[...]                                    # (T, dh)
    p = p_ref[...]                                    # (T, dh)
    # fold 1/sqrt(d_model) into the small (T, dh) operands instead of the score
    qc = (q + u_ref[...]) * scale
    qp = (q + vb_ref[...]) * scale
    if compute_dtype != jnp.float32:
        qc = qc.astype(compute_dtype)
        qp = qp.astype(compute_dtype)
        k = k.astype(compute_dtype)
        p = p.astype(compute_dtype)

    content = jax.lax.dot_general(qc, k, (((1,), (1,)), ((), ())),
                                  preferred_element_type=jnp.float32)   # (T, T)
    pos = jax.lax.dot_general(qp, p, (((1,), (1,)), ((), ())),
                              preferred_element_type=jnp.float32)       # (T, T)

    score = content + _relative_shift_in_kernel(pos)
    if has_mask:
        # finite large-negative instead of -inf: fully-masked rows stay NaN-free
        score = jnp.where(mask_ref[...].astype(jnp.int32) != 0,
                          jnp.float32(-1e30), score)

    m = jnp.max(score, axis=-1, keepdims=True)
    e = jnp.exp(score - m)
    denom = jnp.sum(e, axis=-1, keepdims=True)
    approx = compute_dtype != jnp.float32             # exact recip for the f32 path

    v_val = v_ref[...]
    if compute_dtype != jnp.float32:
        v_val = v_val.astype(compute_dtype)

    if has_attn:
        attn = e * pl.reciprocal(denom, approx=approx)
        attn_ref[...] = attn.astype(attn_ref.dtype)
        a = attn.astype(compute_dtype) if compute_dtype != jnp.float32 else attn
        ctx_ref[...] = jnp.dot(a, v_val, preferred_element_type=jnp.float32)
    else:
        # normalize AFTER the context matmul: T*dh instead of T*T multiplies
        ec = e.astype(compute_dtype) if compute_dtype != jnp.float32 else e
        ctx_raw = jnp.dot(ec, v_val, preferred_element_type=jnp.float32)
        ctx_ref[...] = ctx_raw * pl.reciprocal(denom, approx=approx)


def fused_attention(qh, kh, vh, ph, u3, v3, mask, scale,
                    *, compute_dtype=jnp.bfloat16, return_attn=True):
    B, H, T, dh = qh.shape
    head_io = lambda b, h: (b, h, 0, 0)
    p_map = (lambda b, h: (0, h, 0, 0)) if ph.shape[0] == 1 else head_io

    in_specs = [
        pl.BlockSpec((None, None, T, dh), head_io),               # q
        pl.BlockSpec((None, None, T, dh), head_io),               # k
        pl.BlockSpec((None, None, T, dh), p_map),                 # p (batch-invariant)
        pl.BlockSpec((None, None, T, dh), head_io),               # v
        pl.BlockSpec((None, 1, dh), lambda b, h: (h, 0, 0)),      # u_bias
        pl.BlockSpec((None, 1, dh), lambda b, h: (h, 0, 0)),      # v_bias
    ]
    args = [qh, kh, ph, vh, u3, v3]

    has_mask = mask is not None
    if has_mask:
        m = mask
        if m.ndim == 2:
            m = m[:, None, :]
        if m.shape[1] == 1:            # padding mask (B, 1, T): tiny, keep int32
            m = m.astype(jnp.int32)
            in_specs.append(pl.BlockSpec((None, 1, T), lambda b, h: (b, 0, 0)))
        else:                          # full (B, T, T): int8 quarters DMA + VMEM
            m = m.astype(jnp.int8)
            in_specs.append(pl.BlockSpec((None, T, T), lambda b, h: (b, 0, 0)))
        args.append(m)

    attn_dtype = jnp.float32 if compute_dtype == jnp.float32 else jnp.bfloat16
    out_specs = [pl.BlockSpec((None, None, T, dh), head_io)]
    out_shape = [jax.ShapeDtypeStruct((B, H, T, dh), jnp.float32)]
    if return_attn:
        out_specs.append(pl.BlockSpec((None, None, T, T), head_io))
        out_shape.append(jax.ShapeDtypeStruct((B, H, T, T), attn_dtype))

    outs = pl.pallas_call(
        functools.partial(_attn_kernel, scale=scale, compute_dtype=compute_dtype,
                          has_mask=has_mask, has_attn=return_attn),
        grid=(B, H),   # NOTE(v7x): keep B*H even so both TensorCores stay busy
        in_specs=in_specs,
        out_specs=out_specs,
        out_shape=out_shape,
        compiler_params=pltpu.CompilerParams(
            dimension_semantics=("parallel", "parallel"),
            vmem_limit_bytes=_default_vmem_limit()),
    )(*args)
    if return_attn:
        return outs[0], outs[1]
    return outs[0], None


# -----------------------------------------------------------------------------
# Kernel 3: output projection with resident weight, head reduction in-kernel
#           out[b, t, :] = sum_h ctx[b, h, t, :] @ wo_hd[h] + bo
# -----------------------------------------------------------------------------
def _outproj_kernel(ctx_ref, w_ref, b_ref, o_ref, *, num_heads, compute_dtype):
    x = ctx_ref[...]                                  # (H, tt, dh)
    b = b_ref[...]                                    # (1, Dout)
    if compute_dtype != jnp.float32:
        x = x.astype(compute_dtype)
    acc = None
    for h in range(num_heads):                        # static head reduction, MXU N = d_model
        w = w_ref[h]                                  # (dh, Dout)
        if compute_dtype != jnp.float32:
            w = w.astype(compute_dtype)
        part = jnp.dot(x[h], w, preferred_element_type=jnp.float32)
        acc = part if acc is None else acc + part
    o_ref[...] = acc + b                              # lane-dense (tt, Dout) store


def out_projection(ctx_heads, wo_hd, bo2, *, compute_dtype=jnp.bfloat16):
    """ctx_heads: (B, H, T, dh); wo_hd: (H, dh, Dout); bo2: (1, Dout)."""
    B, H, T, dh = ctx_heads.shape
    Dout = wo_hd.shape[-1]
    tt = _row_tile(T)

    return pl.pallas_call(
        functools.partial(_outproj_kernel, num_heads=H, compute_dtype=compute_dtype),
        grid=(B, T // tt),
        in_specs=[
            pl.BlockSpec((None, H, tt, dh), lambda b_, t: (b_, 0, t, 0)),
            pl.BlockSpec((H, dh, Dout), lambda b_, t: (0, 0, 0)),   # resident weight
            pl.BlockSpec((1, Dout), lambda b_, t: (0, 0)),          # resident bias
        ],
        out_specs=pl.BlockSpec((None, tt, Dout), lambda b_, t: (b_, t, 0)),
        out_shape=jax.ShapeDtypeStruct((B, T, Dout), jnp.float32),
        compiler_params=pltpu.CompilerParams(
            dimension_semantics=("parallel", "parallel"),
            vmem_limit_bytes=_default_vmem_limit()),
    )(ctx_heads, wo_hd, bo2)


# -----------------------------------------------------------------------------
# Full forward pass
# -----------------------------------------------------------------------------
def relative_mha_forward(params, query, key, value, pos_embedding, mask=None,
                         *, compute_dtype=jnp.bfloat16, return_attn=True):
    B, T, D = query.shape
    H = params["num_heads"]

    qh = project_heads(query, params["wq"], params["bq"], H, compute_dtype=compute_dtype)
    kh = project_heads(key, params["wk"], params["bk"], H, compute_dtype=compute_dtype)
    vh = project_heads(value, params["wv"], params["bv"], H, compute_dtype=compute_dtype)
    # pos_embedding is batch-invariant: project once, broadcast via index_map
    ph = project_heads(pos_embedding, params["wp"], None, H, compute_dtype=compute_dtype)

    ctx, attn = fused_attention(qh, kh, vh, ph,
                                params["u_bias3"], params["v_bias3"], mask,
                                1.0 / math.sqrt(D),
                                compute_dtype=compute_dtype, return_attn=return_attn)

    out = out_projection(ctx, params["wo_hd"], params["bo2"], compute_dtype=compute_dtype)
    return out, attn


# -----------------------------------------------------------------------------
# Pure-JAX reference (mirrors the PyTorch forward) for sanity checking.
# -----------------------------------------------------------------------------
def _relative_shift_ref(pos_score):
    B, H, T1, T2 = pos_score.shape
    zeros = jnp.zeros((B, H, T1, 1), pos_score.dtype)
    padded = jnp.concatenate([zeros, pos_score], axis=-1)
    padded = padded.reshape(B, H, T2 + 1, T1)
    return padded[:, :, 1:].reshape(B, H, T1, T2)


def reference_forward(params, query, key, value, pos_embedding, mask=None):
    B, T, D = query.shape
    H = params["num_heads"]
    dh = D // H

    def lin(x, w, b):
        y = x @ w.T
        return y + b if b is not None else y

    q = lin(query, params["wq"], params["bq"]).reshape(B, T, H, dh)
    k = lin(key, params["wk"], params["bk"]).reshape(B, T, H, dh).transpose(0, 2, 1, 3)
    v = lin(value, params["wv"], params["bv"]).reshape(B, T, H, dh).transpose(0, 2, 1, 3)
    pos = jnp.broadcast_to(pos_embedding, (B, T, D))
    p = lin(pos, params["wp"], None).reshape(B, T, H, dh)

    content = jnp.matmul((q + params["u_bias"]).transpose(0, 2, 1, 3),
                         k.transpose(0, 1, 3, 2))
    pos_score = jnp.matmul((q + params["v_bias"]).transpose(0, 2, 1, 3),
                           p.transpose(0, 2, 3, 1))
    pos_score = _relative_shift_ref(pos_score)
    score = (content + pos_score) / math.sqrt(D)
    if mask is not None:
        score = jnp.where(mask[:, None] != 0, -jnp.inf, score)
    attn = jax.nn.softmax(score, axis=-1)
    ctx = jnp.matmul(attn, v).transpose(0, 2, 1, 3).reshape(B, T, D)
    return lin(ctx, params["wo"], params["bo"]), attn


# -----------------------------------------------------------------------------
# Deterministic parameter initialization (shapes from the module __init__),
# with kernel-layout views hoisted to init time.
# -----------------------------------------------------------------------------
def init_params(rng, d_model, num_heads):
    dh = d_model // num_heads
    ks = jax.random.split(rng, 12)
    xavier = math.sqrt(6.0 / (d_model + d_model))
    xavier_uv = math.sqrt(6.0 / (num_heads + dh))
    uni = lambda k, shape, lim: jax.random.uniform(
        k, shape, jnp.float32, minval=-lim, maxval=lim)
    p = {
        "num_heads": num_heads,
        "wq": uni(ks[0], (d_model, d_model), xavier),
        "bq": uni(ks[1], (d_model,), 0.1),
        "wk": uni(ks[2], (d_model, d_model), xavier),
        "bk": uni(ks[3], (d_model,), 0.1),
        "wv": uni(ks[4], (d_model, d_model), xavier),
        "bv": uni(ks[5], (d_model,), 0.1),
        "wp": uni(ks[6], (d_model, d_model), xavier),       # pos_proj has no bias
        "wo": uni(ks[7], (d_model, d_model), xavier),
        "bo": uni(ks[8], (d_model,), 0.1),
        "u_bias": uni(ks[9], (num_heads, dh), xavier_uv),
        "v_bias": uni(ks[10], (num_heads, dh), xavier_uv),
    }
    # hoisted per-call rearrangements (kernel-layout views of the torch weights)
    p["wo_hd"] = p["wo"].T.reshape(num_heads, dh, d_model)
    p["bo2"] = p["bo"].reshape(1, d_model)
    p["u_bias3"] = p["u_bias"].reshape(num_heads, 1, dh)
    p["v_bias3"] = p["v_bias"].reshape(num_heads, 1, dh)
    return p


if __name__ == "__main__":
    # layout-realistic but small: exercises (8,128) tiling, lane rolls, masked paths
    B, T, D, H = 2, 128, 128, 4
    root = jax.random.PRNGKey(0)
    k_par, k_q, k_k, k_v, k_p = jax.random.split(root, 5)

    params = init_params(k_par, D, H)
    query = jax.random.normal(k_q, (B, T, D), jnp.float32)
    key_t = jax.random.normal(k_k, (B, T, D), jnp.float32)
    value = jax.random.normal(k_v, (B, T, D), jnp.float32)
    pos_embedding = jax.random.normal(k_p, (1, T, D), jnp.float32)

    lengths = jnp.array([T, T - 5])
    mask = jnp.arange(T)[None, None, :] >= lengths[:, None, None]    # (B, 1, T) bool

    ref_out, ref_attn = reference_forward(params, query, key_t, value,
                                          pos_embedding, mask=None)
    ref_out_m, ref_attn_m = reference_forward(params, query, key_t, value,
                                              pos_embedding, mask=mask)

    # --- f32, no mask, attention probs returned (tight check) ---
    out, attn = relative_mha_forward(params, query, key_t, value, pos_embedding,
                                     mask=None, compute_dtype=jnp.float32,
                                     return_attn=True)
    jax.block_until_ready((out, attn))
    assert jnp.allclose(out, ref_out, atol=2e-4, rtol=2e-4), "f32 output mismatch"
    assert jnp.allclose(attn, ref_attn, atol=1e-4, rtol=1e-4), "f32 attn mismatch"

    # --- f32, padding mask, attn output dropped (post-matmul normalisation path) ---
    out_m, attn_m = relative_mha_forward(params, query, key_t, value, pos_embedding,
                                         mask=mask, compute_dtype=jnp.float32,
                                         return_attn=False)
    jax.block_until_ready(out_m)
    assert attn_m is None
    assert jnp.allclose(out_m, ref_out_m, atol=2e-4, rtol=2e-4), "masked f32 output mismatch"

    # --- default bf16 MXU path, padding mask, attn kept (relaxed tolerance) ---
    out_bf, attn_bf = relative_mha_forward(params, query, key_t, value, pos_embedding,
                                           mask=mask)
    jax.block_until_ready((out_bf, attn_bf))
    assert jnp.allclose(out_bf, ref_out_m, atol=2e-1, rtol=5e-2), "bf16 output mismatch"
    assert jnp.allclose(attn_bf.astype(jnp.float32), ref_attn_m,
                        atol=5e-2, rtol=5e-2), "bf16 attn mismatch"

    print("KERNEL_OK")
</pallas_src>

<mosaic_0001>
module attributes {stable_mosaic.version = 11 : i64} {
  func.func @_proj_kernel(%arg0: i32, %arg1: i32, %arg2: memref<1x128x128xf32, #tpu.memory_space<vmem>>, %arg3: memref<128x128xf32, #tpu.memory_space<vmem>>, %arg4: memref<4x32xf32, #tpu.memory_space<vmem>>, %arg5: memref<1x4x128x32xf32, #tpu.memory_space<vmem>>) attributes {dimension_semantics = [#tpu.dimension_semantics<parallel>, #tpu.dimension_semantics<parallel>], iteration_bounds = array<i64: 2, 1>, scalar_prefetch = 0 : i64, scratch_operands = 0 : i64, tpu.core_type = #tpu.core_type<tc>, window_params = [{transform_indices = @transform_0, window_bounds = array<i64: 1, 128, 128>}, {pipeline_mode = #tpu.pipeline_mode<synchronous>, transform_indices = @transform_1, window_bounds = array<i64: 128, 128>}, {pipeline_mode = #tpu.pipeline_mode<synchronous>, transform_indices = @transform_2, window_bounds = array<i64: 4, 32>}, {transform_indices = @transform_3, window_bounds = array<i64: 1, 4, 128, 32>}]} {
    %c0 = arith.constant 0 : index
    %c0_0 = arith.constant 0 : index
    %c0_1 = arith.constant 0 : index
    %0 = vector.load %arg2[%c0, %c0_0, %c0_1] : memref<1x128x128xf32, #tpu.memory_space<vmem>>, vector<1x128x128xf32>
    %1 = vector.shape_cast %0 : vector<1x128x128xf32> to vector<128x128xf32>
    %c0_2 = arith.constant 0 : index
    %c0_3 = arith.constant 0 : index
    %2 = vector.load %arg3[%c0_2, %c0_3] : memref<128x128xf32, #tpu.memory_space<vmem>>, vector<32x128xf32>
    %cst = arith.constant dense<0.000000e+00> : vector<128x32xf32>
    %3 = tpu.matmul %1, %2, %cst {dimension_numbers = #tpu.dot_dimension_numbers<[1], [1], [0], [0], [0, 0, 1, 0], [], []>} : vector<128x128xf32>, vector<32x128xf32>, vector<128x32xf32> -> vector<128x32xf32>
    %c0_4 = arith.constant 0 : index
    %c0_5 = arith.constant 0 : index
    %4 = vector.load %arg4[%c0_4, %c0_5] : memref<4x32xf32, #tpu.memory_space<vmem>>, vector<1x32xf32>
    %5 = vector.broadcast %4 : vector<1x32xf32> to vector<128x32xf32>
    %6 = arith.addf %3, %5 : vector<128x32xf32>
    %c0_6 = arith.constant 0 : index
    %c0_7 = arith.constant 0 : index
    %c0_8 = arith.constant 0 : index
    %c0_9 = arith.constant 0 : index
    %7 = vector.load %arg5[%c0_6, %c0_7, %c0_8, %c0_9] : memref<1x4x128x32xf32, #tpu.memory_space<vmem>>, vector<1x1x128x32xf32>
    %8 = vector.shape_cast %7 : vector<1x1x128x32xf32> to vector<128x32xf32>
    %9 = vector.shape_cast %6 : vector<128x32xf32> to vector<1x1x128x32xf32>
    tpu.vector_store %arg5[%c0_6, %c0_7, %c0_8, %c0_9], %9 {strides = array<i32>} : memref<1x4x128x32xf32, #tpu.memory_space<vmem>>, vector<1x1x128x32xf32>,
    %c32 = arith.constant 32 : index
    %c0_10 = arith.constant 0 : index
    %10 = vector.load %arg3[%c32, %c0_10] : memref<128x128xf32, #tpu.memory_space<vmem>>, vector<32x128xf32>
    %cst_11 = arith.constant dense<0.000000e+00> : vector<128x32xf32>
    %11 = tpu.matmul %1, %10, %cst_11 {dimension_numbers = #tpu.dot_dimension_numbers<[1], [1], [0], [0], [0, 0, 1, 0], [], []>} : vector<128x128xf32>, vector<32x128xf32>, vector<128x32xf32> -> vector<128x32xf32>
    %c1 = arith.constant 1 : index
    %c0_12 = arith.constant 0 : index
    %12 = vector.load %arg4[%c1, %c0_12] : memref<4x32xf32, #tpu.memory_space<vmem>>, vector<1x32xf32>
    %13 = vector.broadcast %12 : vector<1x32xf32> to vector<128x32xf32>
    %14 = arith.addf %11, %13 : vector<128x32xf32>
    %c0_13 = arith.constant 0 : index
    %c1_14 = arith.constant 1 : index
    %c0_15 = arith.constant 0 : index
    %c0_16 = arith.constant 0 : index
    %15 = vector.load %arg5[%c0_13, %c1_14, %c0_15, %c0_16] : memref<1x4x128x32xf32, #tpu.memory_space<vmem>>, vector<1x1x128x32xf32>
    %16 = vector.shape_cast %15 : vector<1x1x128x32xf32> to vector<128x32xf32>
    %17 = vector.shape_cast %14 : vector<128x32xf32> to vector<1x1x128x32xf32>
    tpu.vector_store %arg5[%c0_13, %c1_14, %c0_15, %c0_16], %17 {strides = array<i32>} : memref<1x4x128x32xf32, #tpu.memory_space<vmem>>, vector<1x1x128x32xf32>,
    %c64 = arith.constant 64 : index
    %c0_17 = arith.constant 0 : index
    %18 = vector.load %arg3[%c64, %c0_17] : memref<128x128xf32, #tpu.memory_space<vmem>>, vector<32x128xf32>
    %cst_18 = arith.constant dense<0.000000e+00> : vector<128x32xf32>
    %19 = tpu.matmul %1, %18, %cst_18 {dimension_numbers = #tpu.dot_dimension_numbers<[1], [1], [0], [0], [0, 0, 1, 0], [], []>} : vector<128x128xf32>, vector<32x128xf32>, vector<128x32xf32> -> vector<128x32xf32>
    %c2 = arith.constant 2 : index
    %c0_19 = arith.constant 0 : index
    %20 = vector.load %arg4[%c2, %c0_19] : memref<4x32xf32, #tpu.memory_space<vmem>>, vector<1x32xf32>
    %21 = vector.broadcast %20 : vector<1x32xf32> to vector<128x32xf32>
    %22 = arith.addf %19, %21 : vector<128x32xf32>
    %c0_20 = arith.constant 0 : index
    %c2_21 = arith.constant 2 : index
    %c0_22 = arith.constant 0 : index
    %c0_23 = arith.constant 0 : index
    %23 = vector.load %arg5[%c0_20, %c2_21, %c0_22, %c0_23] : memref<1x4x128x32xf32, #tpu.memory_space<vmem>>, vector<1x1x128x32xf32>
    %24 = vector.shape_cast %23 : vector<1x1x128x32xf32> to vector<128x32xf32>
    %25 = vector.shape_cast %22 : vector<128x32xf32> to vector<1x1x128x32xf32>
    tpu.vector_store %arg5[%c0_20, %c2_21, %c0_22, %c0_23], %25 {strides = array<i32>} : memref<1x4x128x32xf32, #tpu.memory_space<vmem>>, vector<1x1x128x32xf32>,
    %c96 = arith.constant 96 : index
    %c0_24 = arith.constant 0 : index
    %26 = vector.load %arg3[%c96, %c0_24] : memref<128x128xf32, #tpu.memory_space<vmem>>, vector<32x128xf32>
    %cst_25 = arith.constant dense<0.000000e+00> : vector<128x32xf32>
    %27 = tpu.matmul %1, %26, %cst_25 {dimension_numbers = #tpu.dot_dimension_numbers<[1], [1], [0], [0], [0, 0, 1, 0], [], []>} : vector<128x128xf32>, vector<32x128xf32>, vector<128x32xf32> -> vector<128x32xf32>
    %c3 = arith.constant 3 : index
    %c0_26 = arith.constant 0 : index
    %28 = vector.load %arg4[%c3, %c0_26] : memref<4x32xf32, #tpu.memory_space<vmem>>, vector<1x32xf32>
    %29 = vector.broadcast %28 : vector<1x32xf32> to vector<128x32xf32>
    %30 = arith.addf %27, %29 : vector<128x32xf32>
    %c0_27 = arith.constant 0 : index
    %c3_28 = arith.constant 3 : index
    %c0_29 = arith.constant 0 : index
    %c0_30 = arith.constant 0 : index
    %31 = vector.load %arg5[%c0_27, %c3_28, %c0_29, %c0_30] : memref<1x4x128x32xf32, #tpu.memory_space<vmem>>, vector<1x1x128x32xf32>
    %32 = vector.shape_cast %31 : vector<1x1x128x32xf32> to vector<128x32xf32>
    %33 = vector.shape_cast %30 : vector<128x32xf32> to vector<1x1x128x32xf32>
    tpu.vector_store %arg5[%c0_27, %c3_28, %c0_29, %c0_30], %33 {strides = array<i32>} : memref<1x4x128x32xf32, #tpu.memory_space<vmem>>, vector<1x1x128x32xf32>,
    return
  }
  func.func @transform_0(%arg0: i32, %arg1: i32) -> (i32, i32, i32) {
    %c0_i32 = arith.constant 0 : i32
    %c0_i32_0 = arith.constant 0 : i32
    return %arg0, %arg1, %c0_i32 : i32, i32, i32
  }
  func.func @transform_1(%arg0: i32, %arg1: i32) -> (i32, i32) {
    %c0_i32 = arith.constant 0 : i32
    %c0_i32_0 = arith.constant 0 : i32
    %c0_i32_1 = arith.constant 0 : i32
    return %c0_i32, %c0_i32_0 : i32, i32
  }
  func.func @transform_2(%arg0: i32, %arg1: i32) -> (i32, i32) {
    %c0_i32 = arith.constant 0 : i32
    %c0_i32_0 = arith.constant 0 : i32
    %c0_i32_1 = arith.constant 0 : i32
    return %c0_i32, %c0_i32_0 : i32, i32
  }
  func.func @transform_3(%arg0: i32, %arg1: i32) -> (i32, i32, i32, i32) {
    %c0_i32 = arith.constant 0 : i32
    %c0_i32_0 = arith.constant 0 : i32
    %c0_i32_1 = arith.constant 0 : i32
    return %arg0, %c0_i32, %arg1, %c0_i32_0 : i32, i32, i32, i32
  }
}

</mosaic_0001>

<llo_original>
// kernel: tpu_custom_call.1
$region0: #{tpu_custom_call.1}
  #allocation0 [shape = 'u32[]', space=smem, size = 0x4, offset = 0x4, fixed_abs, tag = 'smem constant byte address 0x4 - core index']
  #allocation1 [shape = 'u32[144,128]{1,0:T(1,128)}', space=vmem, size = 0x12000, scoped, tag = 'internal scratch']
  %s0 = inlined_call_operand.hbm [shape: f32[2,128,128], index: 0, kind: input, shape index: {}]
  %s1 = inlined_call_operand.hbm [shape: f32[128,128], index: 1, kind: input, shape index: {}]
  %s2 = inlined_call_operand.hbm [shape: f32[4,32], index: 2, kind: input, shape index: {}]
  %s3 = inlined_call_operand.hbm [shape: f32[2,4,128,32], index: 3, kind: output, shape index: {}]
  %s4 = sld [smem:[#allocation0]]
  $region57: #{tpu_custom_call.1} parent=0
    _
  %s6 = ssub.s32 1, %s4
  %s7 = scalar_select 0, %s6, %s4
  $region1: #{tpu_custom_call.1} parent=0
    #allocation2 [shape = 'u8[131072]{0}', space=vmem, size = 0x20000, scoped, tag = 'input window, operand 0']
    #allocation3 [shape = 's32[2]{0}', space=sflag, size = 0x8, scoped, tag = 'scoped memory for tpu_custom_call.1']
    #allocation4 [shape = 's32[2]{0}', space=sflag, size = 0x8, scoped, tag = 'scoped memory for tpu_custom_call.1']
    #allocation5 [shape = 'u8[65536]{0}', space=vmem, size = 0x10000, scoped, tag = 'input window, operand 1, single buffered']
    #allocation6 [shape = 's32[1]{0}', space=sflag, size = 0x4, scoped, tag = 'scoped memory for tpu_custom_call.1']
    #allocation7 [shape = 'u8[2048]{0}', space=vmem, size = 0x800, scoped, tag = 'input window, operand 2, single buffered']
    #allocation8 [shape = 'u8[524288]{0}', space=vmem, size = 0x80000, scoped, tag = 'output window, operand 0']
    %8 = vsyncpa [#allocation3], 0
    %s9 = scalar_lea.sflag [#allocation3], 1
    %10 = vsyncpa %s9, 0
    %11 = vsyncpa [#allocation6], 0
    %12 = vsyncpa [#allocation4], 0
    %s13 = scalar_lea.sflag [#allocation4], 1
    %14 = vsyncpa %s13, 0
    loop: start=0, step=1, limit=4
    $region2: #{tpu_custom_call.1} parent=1 // loop_pre_header
      _
    $region3: #{tpu_custom_call.1} parent=1 // loop_header
      %s16 = sphi 0, %s20
      %p17 = scmp.ge.s32.totalorder %s16, 4
      %s23 = sphi 0, %s35
      %s24 = sphi 0, %s31
      %s25 = sphi 0, %s23
      %s26 = sphi 0, %s24
      %s27 = sphi 0, %s25
      %s28 = sphi 0, %s26
      %s40 = sphi 0, %s42
      %s43 = sphi 0, %s40
      %s44 = sphi 0, %s43
      %s60 = sphi 0, %s44
      %s64 = sphi 0, %s64
      %s66 = sphi 0, %s64
      %s67 = sphi 0, %s66
      %s81 = sphi 0, %s67
      %s85 = sphi 0, %s85
      %s87 = sphi 0, %s85
      %s88 = sphi 0, %s87
      %s102 = sphi 0, %s88
      %s110 = sphi 0, %s112
      %s113 = sphi 0, %s110
      %s114 = sphi 0, %s113
      %s130 = sphi 0, %s114
    $region4: #{tpu_custom_call.1} parent=1 // loop_header_branch
      %19 = sbr.rel (%p17) target = $region8
    $region5: #{tpu_custom_call.1} parent=1 // loop_body
      %s21 = ssub.s32 %s16, 1
      %s22 = ssub.s32 %s16, 2
      %s29 = sadd.s32 1, %s24
      %p30 = scmp.ge.s32.totalorder %s29, 1
      %s31 = scalar_select %p30, 0, %s29
      %s32 = sadd.s32 1, %s23
      %s33 = scalar_select %p30, %s32, %s23
      %p34 = scmp.ge.s32.totalorder %s33, 2
      %s35 = scalar_select %p34, 0, %s33
      %s36 = ssub.s32 %s23, %s35
      %s37 = ssub.s32 %s24, %s31
      %s38 = sor.u32 %s36, %s37
      %p39 = scmp.eq.s32.totalorder %s38, 0
      %s41 = sadd.s32 %s40, 1
      %s42 = scalar_select %p39, %s40, %s41
      %p45 = pneg %p39
      %p46 = scmp.eq.s32.totalorder %s16, 1
      %p47 = por %p45, %p46
      %p48 = scmp.ne.s32.totalorder %s40, %s43
      %p49 = scmp.eq.s32.totalorder %s16, 0
      %p50 = por %p48, %p49
      %p51 = scmp.ne.s32.totalorder %s40, %s43
      %p52 = scmp.eq.s32.totalorder %s21, 1
      %p53 = por %p51, %p52
      %p54 = scmp.ne.s32.totalorder %s43, %s44
      %p55 = scmp.eq.s32.totalorder %s21, 0
      %p56 = por %p54, %p55
      %p57 = scmp.ne.s32.totalorder %s43, %s44
      %p58 = scmp.eq.s32.totalorder %s22, 1
      %p59 = por %p57, %p58
      %p61 = scmp.ne.s32.totalorder %s44, %s60
      %p62 = scmp.eq.s32.totalorder %s22, 0
      %p63 = por %p61, %p62
      %s65 = sadd.s32 %s64, 1
      %p68 = scmp.eq.s32.totalorder %s16, 1
      %p69 = scmp.ne.s32.totalorder %s64, %s66
      %p70 = scmp.eq.s32.totalorder %s16, 0
      %p71 = por %p69, %p70
      %p72 = scmp.ne.s32.totalorder %s64, %s66
      %p73 = scmp.eq.s32.totalorder %s21, 1
      %p74 = por %p72, %p73
      %p75 = scmp.ne.s32.totalorder %s66, %s67
      %p76 = scmp.eq.s32.totalorder %s21, 0
      %p77 = por %p75, %p76
      %p78 = scmp.ne.s32.totalorder %s66, %s67
      %p79 = scmp.eq.s32.totalorder %s22, 1
      %p80 = por %p78, %p79
      %p82 = scmp.ne.s32.totalorder %s67, %s81
      %p83 = scmp.eq.s32.totalorder %s22, 0
      %p84 = por %p82, %p83
      %s86 = sadd.s32 %s85, 1
      %p89 = scmp.eq.s32.totalorder %s16, 1
      %p90 = scmp.ne.s32.totalorder %s85, %s87
      %p91 = scmp.eq.s32.totalorder %s16, 0
      %p92 = por %p90, %p91
      %p93 = scmp.ne.s32.totalorder %s85, %s87
      %p94 = scmp.eq.s32.totalorder %s21, 1
      %p95 = por %p93, %p94
      %p96 = scmp.ne.s32.totalorder %s87, %s88
      %p97 = scmp.eq.s32.totalorder %s21, 0
      %p98 = por %p96, %p97
      %p99 = scmp.ne.s32.totalorder %s87, %s88
      %p100 = scmp.eq.s32.totalorder %s22, 1
      %p101 = por %p99, %p100
      %p103 = scmp.ne.s32.totalorder %s88, %s102
      %p104 = scmp.eq.s32.totalorder %s22, 0
      %p105 = por %p103, %p104
      %s106 = ssub.s32 %s23, %s35
      %s107 = ssub.s32 %s24, %s31
      %s108 = sor.u32 %s106, %s107
      %p109 = scmp.eq.s32.totalorder %s108, 0
      %s111 = sadd.s32 %s110, 1
      %s112 = scalar_select %p109, %s110, %s111
      %p115 = pneg %p109
      %p116 = scmp.eq.s32.totalorder %s16, 1
      %p117 = por %p115, %p116
      %p118 = scmp.ne.s32.totalorder %s110, %s113
      %p119 = scmp.eq.s32.totalorder %s16, 0
      %p120 = por %p118, %p119
      %p121 = scmp.ne.s32.totalorder %s110, %s113
      %p122 = scmp.eq.s32.totalorder %s21, 1
      %p123 = por %p121, %p122
      %p124 = scmp.ne.s32.totalorder %s113, %s114
      %p125 = scmp.eq.s32.totalorder %s21, 0
      %p126 = por %p124, %p125
      %p127 = scmp.ne.s32.totalorder %s113, %s114
      %p128 = scmp.eq.s32.totalorder %s22, 1
      %p129 = por %p127, %p128
      %p131 = scmp.ne.s32.totalorder %s114, %s130
      %p132 = scmp.eq.s32.totalorder %s22, 0
      %p133 = por %p131, %p132
      %p134 = scmp.le.s32.totalorder 1, %s16
      %p135 = scmp.lt.s32.totalorder %s16, 3
      %p136 = pnand %p134, %p135
      %p137 = pneg %p136
      // Predicated region
      $region9: #{tpu_custom_call.1} parent=5 // pred_check
        _
      $region10: #{tpu_custom_call.1} parent=5 // pred_check_branch
        %139 = sbr.rel (%p136) target = $region12
      $region11: #{tpu_custom_call.1} parent=5 // pred_region
        %s140 = ssub.s32 %s16, 1
        // Predicated region
        $region13: #{tpu_custom_call.1} parent=11 // pred_check
          %p141 = pneg %p77
        $region14: #{tpu_custom_call.1} parent=11 // pred_check_branch
          %143 = sbr.rel (%p141) target = $region16
        $region15: #{tpu_custom_call.1} parent=11 // pred_region
          %s145 = ssub.s32 2048, 2048
          %146 = vsyncadd [#allocation6], %s145
          %s147 = sshll.u32 [#allocation5], 4
          %s148 = int_to_ptr.vmem [resolvable:$true] %s147
          %153 = dma.hbm_to_vmem [thread:$0]  %s1, 2048, %s148, [#allocation6], 128, 128, 8
        $region16: #{tpu_custom_call.1} parent=11 // pred_fallthru
          _
        // Predicated region
        $region17: #{tpu_custom_call.1} parent=11 // pred_check
          %p154 = pneg %p98
        $region18: #{tpu_custom_call.1} parent=11 // pred_check_branch
          %156 = sbr.rel (%p154) target = $region20
        $region19: #{tpu_custom_call.1} parent=11 // pred_region
          %s158 = ssub.s32 64, 64
          %159 = vsyncadd [#allocation6], %s158
          %s161 = sshll.u32 [#allocation7], 4
          %s162 = int_to_ptr.vmem [resolvable:$true] %s161
          %164 = dma.hbm_to_vmem [thread:$0]  %s2, 64, %s162, [#allocation6]
        $region20: #{tpu_custom_call.1} parent=11 // pred_fallthru
          _
      $region12: #{tpu_custom_call.1} parent=5 // pred_fallthru
        _
      %p165 = scmp.lt.s32.totalorder %s16, 2
      // Predicated region
      $region21: #{tpu_custom_call.1} parent=5 // pred_check
        %p166 = pneg %p165
      $region22: #{tpu_custom_call.1} parent=5 // pred_check_branch
        %168 = sbr.rel (%p166) target = $region24
      $region23: #{tpu_custom_call.1} parent=5 // pred_region
        // Predicated region
        $region25: #{tpu_custom_call.1} parent=23 // pred_check
          %p169 = pneg %p50
        $region26: #{tpu_custom_call.1} parent=23 // pred_check_branch
          %171 = sbr.rel (%p169) target = $region28
        $region27: #{tpu_custom_call.1} parent=23 // pred_region
          %s172 = sand.u32 %s40, 1
          %s173 = scalar_lea.sflag [#allocation3], %s172
          %s174 = sand.u32 %s40, 1
          %s175 = smul.addr %s174, 128
          %s176 = scalar_lea.vmem [#allocation2], %s175
          %s177 = smul.u32 16, %s24
          %s179 = ssub.s32 2048, 2048
          %180 = vsyncadd %s173, %s179
          %s181 = smul.addr %s23, 16
          %s182 = sadd.s32 %s177, %s181
          %s183 = smul.addr %s182, 128
          %s184 = scalar_lea.hbm %s0, %s183
          %s185 = sshll.u32 %s176, 4
          %s186 = int_to_ptr.vmem [resolvable:$true] %s185
          %191 = dma.hbm_to_vmem [thread:$0]  %s184, 2048, %s186, %s173, 128, 128, 8
        $region28: #{tpu_custom_call.1} parent=23 // pred_fallthru
          _
      $region24: #{tpu_custom_call.1} parent=5 // pred_fallthru
        _
      %p192 = scmp.le.s32.totalorder 1, %s16
      %p193 = scmp.lt.s32.totalorder %s16, 3
      %p194 = pnand %p192, %p193
      %p195 = pneg %p194
      // Predicated region
      $region29: #{tpu_custom_call.1} parent=5 // pred_check
        _
      $region30: #{tpu_custom_call.1} parent=5 // pred_check_branch
        %197 = sbr.rel (%p194) target = $region32
      $region31: #{tpu_custom_call.1} parent=5 // pred_region
        %s198 = ssub.s32 %s16, 1
        %s199 = sand.u32 %s43, 1
        %s200 = scalar_lea.sflag [#allocation3], %s199
        %s201 = sand.u32 %s43, 1
        %s202 = smul.addr %s201, 128
        %s203 = scalar_lea.vmem [#allocation2], %s202
        // Predicated region
        $region33: #{tpu_custom_call.1} parent=31 // pred_check
          %p204 = pneg %p56
        $region34: #{tpu_custom_call.1} parent=31 // pred_check_branch
          %206 = sbr.rel (%p204) target = $region36
        $region35: #{tpu_custom_call.1} parent=31 // pred_region
          %207 = dma.done %s200, 2048
        $region36: #{tpu_custom_call.1} parent=31 // pred_fallthru
          _
        // Predicated region
        $region37: #{tpu_custom_call.1} parent=31 // pred_check
          %p208 = pneg %p77
        $region38: #{tpu_custom_call.1} parent=31 // pred_check_branch
          %210 = sbr.rel (%p208) target = $region40
        $region39: #{tpu_custom_call.1} parent=31 // pred_region
          %211 = dma.done [#allocation6], 2048
        $region40: #{tpu_custom_call.1} parent=31 // pred_fallthru
          _
        // Predicated region
        $region41: #{tpu_custom_call.1} parent=31 // pred_check
          %p212 = pneg %p98
        $region42: #{tpu_custom_call.1} parent=31 // pred_check_branch
          %214 = sbr.rel (%p212) target = $region44
        $region43: #{tpu_custom_call.1} parent=31 // pred_region
          %215 = dma.done [#allocation6], 64
        $region44: #{tpu_custom_call.1} parent=31 // pred_fallthru
          _
        %s216 = sand.u32 %s43, 1
        %s217 = scalar_lea.sflag [#allocation3], %s216
        %s218 = sand.u32 %s43, 1
        %s219 = smul.addr %s218, 128
        %s220 = scalar_lea.vmem [#allocation2], %s219
        %p221 = pneg %p56
        %p222 = pneg %p53
        %p223 = pneg %p77
        %p224 = pneg %p74
        %p225 = pneg %p98
        %p226 = pneg %p95
        %p227 = pneg %p126
        %p228 = pneg %p123
        %s229 = sand.u32 %s113, 1
        %s230 = scalar_lea.sflag [#allocation4], %s229
        %s231 = sand.u32 %s113, 1
        %s232 = smul.addr %s231, 512
        %s233 = scalar_lea.vmem [#allocation8], %s232
        %s234 = smul.u32 16, %s26
        %s235 = smul.u32 16, %s26
        %v236 = vld [vmem:[%s203] sm:$0xff]
        %v237 = vld [vmem:[%s203 + $0x8] sm:$0xff]
        %v238 = vld [vmem:[%s203 + $0x10] sm:$0xff]
        %v239 = vld [vmem:[%s203 + $0x18] sm:$0xff]
        %v240 = vld [vmem:[%s203 + $0x20] sm:$0xff]
        %v241 = vld [vmem:[%s203 + $0x28] sm:$0xff]
        %v242 = vld [vmem:[%s203 + $0x30] sm:$0xff]
        %v243 = vld [vmem:[%s203 + $0x38] sm:$0xff]
        %v244 = vld [vmem:[%s203 + $0x40] sm:$0xff]
        %v245 = vld [vmem:[%s203 + $0x48] sm:$0xff]
        %v246 = vld [vmem:[%s203 + $0x50] sm:$0xff]
        %v247 = vld [vmem:[%s203 + $0x58] sm:$0xff]
        %v248 = vld [vmem:[%s203 + $0x60] sm:$0xff]
        %v249 = vld [vmem:[%s203 + $0x68] sm:$0xff]
        %v250 = vld [vmem:[%s203 + $0x70] sm:$0xff]
        %v251 = vld [vmem:[%s203 + $0x78] sm:$0xff]
        %v252 = vld [vmem:[#allocation5] sm:$0xff]
        %v253 = vld [vmem:[#allocation5 + $0x8] sm:$0xff]
        %v254 = vld [vmem:[#allocation5 + $0x10] sm:$0xff]
        %v255 = vld [vmem:[#allocation5 + $0x18] sm:$0xff]
        %v256 = vld [vmem:[#allocation7] sm:$0x1]
        %v257 = vlaneseq
        %v258 = vshrl.u32 %v257, 7
        %v259 = vsub.s32 0, %v258
        %v260 = vrot.slane %v256, %v259
        %261 = vmatprep.subr.mxu0 0.0
        %262 = vmatpush1.xpose.msra.mxu0 %v252
        %263 = vmatprep.subr.mxu0 0.0
        %264 = vmatpush1.xpose.msra.mxu0 %v253
        %265 = vmatprep.subr.mxu0 0.0
        %266 = vmatpush1.xpose.msra.mxu0 %v254
        %267 = vmatprep.subr.mxu0 0.0
        %268 = vmatpush1.xpose.msra.mxu0 %v255
        %269 = vmatprep.subr.mxu0 0.0
        %270 = vmatpush1.xpose.msra.mxu0 0.0
        %271 = vmatprep.subr.mxu0 0.0
        %272 = vmatpush1.xpose.msra.mxu0 0.0
        %273 = vmatprep.subr.mxu0 0.0
        %274 = vmatpush1.xpose.msra.mxu0 0.0
        %275 = vmatprep.subr.mxu0 0.0
        %276 = vmatpush1.xpose.msra.mxu0 0.0
        %277 = vmatprep.subr.mxu0 0.0
        %278 = vmatpush1.xpose.msra.mxu0 0.0
        %279 = vmatprep.subr.mxu0 0.0
        %280 = vmatpush1.xpose.msra.mxu0 0.0
        %281 = vmatprep.subr.mxu0 0.0
        %282 = vmatpush1.xpose.msra.mxu0 0.0
        %283 = vmatprep.subr.mxu0 0.0
        %284 = vmatpush1.xpose.msra.mxu0 0.0
        %285 = vmatprep.subr.mxu0 0.0
        %286 = vmatpush1.xpose.msra.mxu0 0.0
        %287 = vmatprep.subr.mxu0 0.0
        %288 = vmatpush1.xpose.msra.mxu0 0.0
        %289 = vmatprep.subr.mxu0 0.0
        %290 = vmatpush1.xpose.msra.mxu0 0.0
        %291 = vmatprep.subr.mxu0 0.0
        %292 = vmatpush1.xpose.msra.mxu0 0.0
        %293 = vmatprep.subr.mxu0 0.0
        %294 = vmatpush1.xpose.msra.mxu0 0.0
        %295 = vmatprep.subr.mxu0 0.0
        %296 = vmatpush1.xpose.msra.mxu0 0.0
        %297 = vmatprep.subr.mxu0 0.0
        %298 = vmatpush1.xpose.msra.mxu0 0.0
        %299 = vmatprep.subr.mxu0 0.0
        %300 = vmatpush1.xpose.msra.mxu0 0.0
        %301 = vmatprep.subr.mxu0 0.0
        %302 = vmatpush1.xpose.msra.mxu0 0.0
        %303 = vmatprep.subr.mxu0 0.0
        %304 = vmatpush1.xpose.msra.mxu0 0.0
        %305 = vmatprep.subr.mxu0 0.0
        %306 = vmatpush1.xpose.msra.mxu0 0.0
        %307 = vmatprep.subr.mxu0 0.0
        %308 = vmatpush1.xpose.msra.mxu0 0.0
        %309 = vmatprep.subr.mxu0 0.0
        %310 = vmatpush1.xpose.msra.mxu0 0.0
        %311 = vmatprep.subr.mxu0 0.0
        %312 = vmatpush1.xpose.msra.mxu0 0.0
        %313 = vmatprep.subr.mxu0 0.0
        %314 = vmatpush1.xpose.msra.mxu0 0.0
        %315 = vmatprep.subr.mxu0 0.0
        %316 = vmatpush1.xpose.msra.mxu0 0.0
        %317 = vmatprep.subr.mxu0 0.0
        %318 = vmatpush1.xpose.msra.mxu0 0.0
        %319 = vmatprep.subr.mxu0 0.0
        %320 = vmatpush1.xpose.msra.mxu0 0.0
        %321 = vmatprep.subr.mxu0 0.0
        %322 = vmatpush1.xpose.msra.mxu0 0.0
        %323 = vmatprep.subr.mxu0 0.0
        %324 = vmatpush1.xpose.msra.mxu0 0.0
        %325 = vmatprep.mubr.f32.mxu0 0.0
        %326 = vmatmul.mubr.f32.gmra.mrb[0].mxu0 %v236
        %v327 = vpop.f32.mrb[0].mxu0
        %v328 = vadd.f32 %v260, %v327
        %v329 = vpop.f32.mrb[0].mxu0
        %330 = vmatprep.mubr.f32.mxu0 0.0
        %331 = vmatmul.mubr.f32.gmra.mrb[0].mxu0 %v237
        %v332 = vpop.f32.mrb[0].mxu0
        %v333 = vadd.f32 %v260, %v332
        %v334 = vpop.f32.mrb[0].mxu0
        %335 = vmatprep.mubr.f32.mxu0 0.0
        %336 = vmatmul.mubr.f32.gmra.mrb[0].mxu0 %v238
        %v337 = vpop.f32.mrb[0].mxu0
        %v338 = vadd.f32 %v260, %v337
        %v339 = vpop.f32.mrb[0].mxu0
        %340 = vmatprep.mubr.f32.mxu0 0.0
        %341 = vmatmul.mubr.f32.gmra.mrb[0].mxu0 %v239
        %v342 = vpop.f32.mrb[0].mxu0
        %v343 = vadd.f32 %v260, %v342
        %v344 = vpop.f32.mrb[0].mxu0
        %345 = vmatprep.mubr.f32.mxu0 0.0
        %346 = vmatmul.mubr.f32.gmra.mrb[0].mxu0 %v240
        %v347 = vpop.f32.mrb[0].mxu0
        %v348 = vadd.f32 %v260, %v347
        %v349 = vpop.f32.mrb[0].mxu0
        %350 = vmatprep.mubr.f32.mxu0 0.0
        %351 = vmatmul.mubr.f32.gmra.mrb[0].mxu0 %v241
        %v352 = vpop.f32.mrb[0].mxu0
        %v353 = vadd.f32 %v260, %v352
        %v354 = vpop.f32.mrb[0].mxu0
        %355 = vmatprep.mubr.f32.mxu0 0.0
        %356 = vmatmul.mubr.f32.gmra.mrb[0].mxu0 %v242
        %v357 = vpop.f32.mrb[0].mxu0
        %v358 = vadd.f32 %v260, %v357
        %v359 = vpop.f32.mrb[0].mxu0
        %360 = vmatprep.mubr.f32.mxu0 0.0
        %361 = vmatmul.mubr.f32.gmra.mrb[0].mxu0 %v243
        %v362 = vpop.f32.mrb[0].mxu0
        %v363 = vadd.f32 %v260, %v362
        %v364 = vpop.f32.mrb[0].mxu0
        %365 = vmatprep.mubr.f32.mxu0 0.0
        %366 = vmatmul.mubr.f32.gmra.mrb[0].mxu0 %v244
        %v367 = vpop.f32.mrb[0].mxu0
        %v368 = vadd.f32 %v260, %v367
        %v369 = vpop.f32.mrb[0].mxu0
        %370 = vmatprep.mubr.f32.mxu0 0.0
        %371 = vmatmul.mubr.f32.gmra.mrb[0].mxu0 %v245
        %v372 = vpop.f32.mrb[0].mxu0
        %v373 = vadd.f32 %v260, %v372
        %v374 = vpop.f32.mrb[0].mxu0
        %375 = vmatprep.mubr.f32.mxu0 0.0
        %376 = vmatmul.mubr.f32.gmra.mrb[0].mxu0 %v246
        %v377 = vpop.f32.mrb[0].mxu0
        %v378 = vadd.f32 %v260, %v377
        %v379 = vpop.f32.mrb[0].mxu0
        %380 = vmatprep.mubr.f32.mxu0 0.0
        %381 = vmatmul.mubr.f32.gmra.mrb[0].mxu0 %v247
        %v382 = vpop.f32.mrb[0].mxu0
        %v383 = vadd.f32 %v260, %v382
        %v384 = vpop.f32.mrb[0].mxu0
        %385 = vmatprep.mubr.f32.mxu0 0.0
        %386 = vmatmul.mubr.f32.gmra.mrb[0].mxu0 %v248
        %v387 = vpop.f32.mrb[0].mxu0
        %v388 = vadd.f32 %v260, %v387
        %v389 = vpop.f32.mrb[0].mxu0
        %390 = vmatprep.mubr.f32.mxu0 0.0
        %391 = vmatmul.mubr.f32.gmra.mrb[0].mxu0 %v249
        %v392 = vpop.f32.mrb[0].mxu0
        %v393 = vadd.f32 %v260, %v392
        %v394 = vpop.f32.mrb[0].mxu0
        %395 = vmatprep.mubr.f32.mxu0 0.0
        %396 = vmatmul.mubr.f32.gmra.mrb[0].mxu0 %v250
        %v397 = vpop.f32.mrb[0].mxu0
        %v398 = vadd.f32 %v260, %v397
        %v399 = vpop.f32.mrb[0].mxu0
        %400 = vmatprep.mubr.f32.mxu0 0.0
        %401 = vmatmul.mubr.f32.gmra.mrb[0].mxu0 %v251
        %v402 = vpop.f32.mrb[0].mxu0
        %v403 = vadd.f32 %v260, %v402
        %v404 = vpop.f32.mrb[0].mxu0
        %405 = vdwg.mxu0
        %vm406 = vcmask 261120
        %407 = vst.msk [vmem:[%s233] sm:$0xff] %vm406, %v328
        %408 = vst.msk [vmem:[%s233 + $0x8] sm:$0xff] %vm406, %v333
        %409 = vst.msk [vmem:[%s233 + $0x10] sm:$0xff] %vm406, %v338
        %410 = vst.msk [vmem:[%s233 + $0x18] sm:$0xff] %vm406, %v343
        %411 = vst.msk [vmem:[%s233 + $0x20] sm:$0xff] %vm406, %v348
        %412 = vst.msk [vmem:[%s233 + $0x28] sm:$0xff] %vm406, %v353
        %413 = vst.msk [vmem:[%s233 + $0x30] sm:$0xff] %vm406, %v358
        %414 = vst.msk [vmem:[%s233 + $0x38] sm:$0xff] %vm406, %v363
        %415 = vst.msk [vmem:[%s233 + $0x40] sm:$0xff] %vm406, %v368
        %416 = vst.msk [vmem:[%s233 + $0x48] sm:$0xff] %vm406, %v373
        %417 = vst.msk [vmem:[%s233 + $0x50] sm:$0xff] %vm406, %v378
        %418 = vst.msk [vmem:[%s233 + $0x58] sm:$0xff] %vm406, %v383
        %419 = vst.msk [vmem:[%s233 + $0x60] sm:$0xff] %vm406, %v388
        %420 = vst.msk [vmem:[%s233 + $0x68] sm:$0xff] %vm406, %v393
        %421 = vst.msk [vmem:[%s233 + $0x70] sm:$0xff] %vm406, %v398
        %422 = vst.msk [vmem:[%s233 + $0x78] sm:$0xff] %vm406, %v403
        %v423 = vld [vmem:[#allocation5 + $0x20] sm:$0xff]
        %v424 = vld [vmem:[#allocation5 + $0x28] sm:$0xff]
        %v425 = vld [vmem:[#allocation5 + $0x30] sm:$0xff]
        %v426 = vld [vmem:[#allocation5 + $0x38] sm:$0xff]
        %v427 = vld [vmem:[#allocation7 + $0x1] sm:$0x1]
        %v428 = vlaneseq
        %v429 = vshrl.u32 %v428, 7
        %v430 = vsub.s32 0, %v429
        %v431 = vrot.slane %v427, %v430
        %432 = vmatprep.subr.mxu0 0.0
        %433 = vmatpush1.xpose.msra.mxu0 %v423
        %434 = vmatprep.subr.mxu0 0.0
        %435 = vmatpush1.xpose.msra.mxu0 %v424
        %436 = vmatprep.subr.mxu0 0.0
        %437 = vmatpush1.xpose.msra.mxu0 %v425
        %438 = vmatprep.subr.mxu0 0.0
        %439 = vmatpush1.xpose.msra.mxu0 %v426
        %440 = vmatprep.subr.mxu0 0.0
        %441 = vmatpush1.xpose.msra.mxu0 0.0
        %442 = vmatprep.subr.mxu0 0.0
        %443 = vmatpush1.xpose.msra.mxu0 0.0
        %444 = vmatprep.subr.mxu0 0.0
        %445 = vmatpush1.xpose.msra.mxu0 0.0
        %446 = vmatprep.subr.mxu0 0.0
        %447 = vmatpush1.xpose.msra.mxu0 0.0
        %448 = vmatprep.subr.mxu0 0.0
        %449 = vmatpush1.xpose.msra.mxu0 0.0
        %450 = vmatprep.subr.mxu0 0.0
        %451 = vmatpush1.xpose.msra.mxu0 0.0
        %452 = vmatprep.subr.mxu0 0.0
        %453 = vmatpush1.xpose.msra.mxu0 0.0
        %454 = vmatprep.subr.mxu0 0.0
        %455 = vmatpush1.xpose.msra.mxu0 0.0
        %456 = vmatprep.subr.mxu0 0.0
        %457 = vmatpush1.xpose.msra.mxu0 0.0
        %458 = vmatprep.subr.mxu0 0.0
        %459 = vmatpush1.xpose.msra.mxu0 0.0
        %460 = vmatprep.subr.mxu0 0.0
        %461 = vmatpush1.xpose.msra.mxu0 0.0
        %462 = vmatprep.subr.mxu0 0.0
        %463 = vmatpush1.xpose.msra.mxu0 0.0
        %464 = vmatprep.subr.mxu0 0.0
        %465 = vmatpush1.xpose.msra.mxu0 0.0
        %466 = vmatprep.subr.mxu0 0.0
        %467 = vmatpush1.xpose.msra.mxu0 0.0
        %468 = vmatprep.subr.mxu0 0.0
        %469 = vmatpush1.xpose.msra.mxu0 0.0
        %470 = vmatprep.subr.mxu0 0.0
        %471 = vmatpush1.xpose.msra.mxu0 0.0
        %472 = vmatprep.subr.mxu0 0.0
        %473 = vmatpush1.xpose.msra.mxu0 0.0
        %474 = vmatprep.subr.mxu0 0.0
        %475 = vmatpush1.xpose.msra.mxu0 0.0
        %476 = vmatprep.subr.mxu0 0.0
        %477 = vmatpush1.xpose.msra.mxu0 0.0
        %478 = vmatprep.subr.mxu0 0.0
        %479 = vmatpush1.xpose.msra.mxu0 0.0
        %480 = vmatprep.subr.mxu0 0.0
        %481 = vmatpush1.xpose.msra.mxu0 0.0
        %482 = vmatprep.subr.mxu0 0.0
        %483 = vmatpush1.xpose.msra.mxu0 0.0
        %484 = vmatprep.subr.mxu0 0.0
        %485 = vmatpush1.xpose.msra.mxu0 0.0
        %486 = vmatprep.subr.mxu0 0.0
        %487 = vmatpush1.xpose.msra.mxu0 0.0
        %488 = vmatprep.subr.mxu0 0.0
        %489 = vmatpush1.xpose.msra.mxu0 0.0
        %490 = vmatprep.subr.mxu0 0.0
        %491 = vmatpush1.xpose.msra.mxu0 0.0
        %492 = vmatprep.subr.mxu0 0.0
        %493 = vmatpush1.xpose.msra.mxu0 0.0
        %494 = vmatprep.subr.mxu0 0.0
        %495 = vmatpush1.xpose.msra.mxu0 0.0
        %496 = vmatprep.mubr.f32.mxu0 0.0
        %497 = vmatmul.mubr.f32.gmra.mrb[0].mxu0 %v236
        %v498 = vpop.f32.mrb[0].mxu0
        %v499 = vadd.f32 %v431, %v498
        %v500 = vpop.f32.mrb[0].mxu0
        %501 = vmatprep.mubr.f32.mxu0 0.0
        %502 = vmatmul.mubr.f32.gmra.mrb[0].mxu0 %v237
        %v503 = vpop.f32.mrb[0].mxu0
        %v504 = vadd.f32 %v431, %v503
        %v505 = vpop.f32.mrb[0].mxu0
        %506 = vmatprep.mubr.f32.mxu0 0.0
        %507 = vmatmul.mubr.f32.gmra.mrb[0].mxu0 %v238
        %v508 = vpop.f32.mrb[0].mxu0
        %v509 = vadd.f32 %v431, %v508
        %v510 = vpop.f32.mrb[0].mxu0
        %511 = vmatprep.mubr.f32.mxu0 0.0
        %512 = vmatmul.mubr.f32.gmra.mrb[0].mxu0 %v239
        %v513 = vpop.f32.mrb[0].mxu0
        %v514 = vadd.f32 %v431, %v513
        %v515 = vpop.f32.mrb[0].mxu0
        %516 = vmatprep.mubr.f32.mxu0 0.0
        %517 = vmatmul.mubr.f32.gmra.mrb[0].mxu0 %v240
        %v518 = vpop.f32.mrb[0].mxu0
        %v519 = vadd.f32 %v431, %v518
        %v520 = vpop.f32.mrb[0].mxu0
        %521 = vmatprep.mubr.f32.mxu0 0.0
        %522 = vmatmul.mubr.f32.gmra.mrb[0].mxu0 %v241
        %v523 = vpop.f32.mrb[0].mxu0
        %v524 = vadd.f32 %v431, %v523
        %v525 = vpop.f32.mrb[0].mxu0
        %526 = vmatprep.mubr.f32.mxu0 0.0
        %527 = vmatmul.mubr.f32.gmra.mrb[0].mxu0 %v242
        %v528 = vpop.f32.mrb[0].mxu0
        %v529 = vadd.f32 %v431, %v528
        %v530 = vpop.f32.mrb[0].mxu0
        %531 = vmatprep.mubr.f32.mxu0 0.0
        %532 = vmatmul.mubr.f32.gmra.mrb[0].mxu0 %v243
        %v533 = vpop.f32.mrb[0].mxu0
        %v534 = vadd.f32 %v431, %v533
        %v535 = vpop.f32.mrb[0].mxu0
        %536 = vmatprep.mubr.f32.mxu0 0.0
        %537 = vmatmul.mubr.f32.gmra.mrb[0].mxu0 %v244
        %v538 = vpop.f32.mrb[0].mxu0
        %v539 = vadd.f32 %v431, %v538
        %v540 = vpop.f32.mrb[0].mxu0
        %541 = vmatprep.mubr.f32.mxu0 0.0
        %542 = vmatmul.mubr.f32.gmra.mrb[0].mxu0 %v245
        %v543 = vpop.f32.mrb[0].mxu0
        %v544 = vadd.f32 %v431, %v543
        %v545 = vpop.f32.mrb[0].mxu0
        %546 = vmatprep.mubr.f32.mxu0 0.0
        %547 = vmatmul.mubr.f32.gmra.mrb[0].mxu0 %v246
        %v548 = vpop.f32.mrb[0].mxu0
        %v549 = vadd.f32 %v431, %v548
        %v550 = vpop.f32.mrb[0].mxu0
        %551 = vmatprep.mubr.f32.mxu0 0.0
        %552 = vmatmul.mubr.f32.gmra.mrb[0].mxu0 %v247
        %v553 = vpop.f32.mrb[0].mxu0
        %v554 = vadd.f32 %v431, %v553
        %v555 = vpop.f32.mrb[0].mxu0
        %556 = vmatprep.mubr.f32.mxu0 0.0
        %557 = vmatmul.mubr.f32.gmra.mrb[0].mxu0 %v248
        %v558 = vpop.f32.mrb[0].mxu0
        %v559 = vadd.f32 %v431, %v558
        %v560 = vpop.f32.mrb[0].mxu0
        %561 = vmatprep.mubr.f32.mxu0 0.0
        %562 = vmatmul.mubr.f32.gmra.mrb[0].mxu0 %v249
        %v563 = vpop.f32.mrb[0].mxu0
        %v564 = vadd.f32 %v431, %v563
        %v565 = vpop.f32.mrb[0].mxu0
        %566 = vmatprep.mubr.f32.mxu0 0.0
        %567 = vmatmul.mubr.f32.gmra.mrb[0].mxu0 %v250
        %v568 = vpop.f32.mrb[0].mxu0
        %v569 = vadd.f32 %v431, %v568
        %v570 = vpop.f32.mrb[0].mxu0
        %571 = vmatprep.mubr.f32.mxu0 0.0
        %572 = vmatmul.mubr.f32.gmra.mrb[0].mxu0 %v251
        %v573 = vpop.f32.mrb[0].mxu0
        %v574 = vadd.f32 %v431, %v573
        %v575 = vpop.f32.mrb[0].mxu0
        %576 = vdwg.mxu0
        %s577 = scalar_lea.vmem %s233, 128 [#allocation8]
        %578 = vst.msk [vmem:[%s577] sm:$0xff] %vm406, %v499
        %579 = vst.msk [vmem:[%s577 + $0x8] sm:$0xff] %vm406, %v504
        %580 = vst.msk [vmem:[%s577 + $0x10] sm:$0xff] %vm406, %v509
        %581 = vst.msk [vmem:[%s577 + $0x18] sm:$0xff] %vm406, %v514
        %582 = vst.msk [vmem:[%s577 + $0x20] sm:$0xff] %vm406, %v519
        %583 = vst.msk [vmem:[%s577 + $0x28] sm:$0xff] %vm406, %v524
        %584 = vst.msk [vmem:[%s577 + $0x30] sm:$0xff] %vm406, %v529
        %585 = vst.msk [vmem:[%s577 + $0x38] sm:$0xff] %vm406, %v534
        %586 = vst.msk [vmem:[%s577 + $0x40] sm:$0xff] %vm406, %v539
        %587 = vst.msk [vmem:[%s577 + $0x48] sm:$0xff] %vm406, %v544
        %588 = vst.msk [vmem:[%s577 + $0x50] sm:$0xff] %vm406, %v549
        %589 = vst.msk [vmem:[%s577 + $0x58] sm:$0xff] %vm406, %v554
        %590 = vst.msk [vmem:[%s577 + $0x60] sm:$0xff] %vm406, %v559
        %591 = vst.msk [vmem:[%s577 + $0x68] sm:$0xff] %vm406, %v564
        %592 = vst.msk [vmem:[%s577 + $0x70] sm:$0xff] %vm406, %v569
        %593 = vst.msk [vmem:[%s577 + $0x78] sm:$0xff] %vm406, %v574
        %v594 = vld [vmem:[#allocation5 + $0x40] sm:$0xff]
        %v595 = vld [vmem:[#allocation5 + $0x48] sm:$0xff]
        %v596 = vld [vmem:[#allocation5 + $0x50] sm:$0xff]
        %v597 = vld [vmem:[#allocation5 + $0x58] sm:$0xff]
        %v598 = vld [vmem:[#allocation7 + $0x2] sm:$0x1]
        %v599 = vlaneseq
        %v600 = vshrl.u32 %v599, 7
        %v601 = vsub.s32 0, %v600
        %v602 = vrot.slane %v598, %v601
        %603 = vmatprep.subr.mxu0 0.0
        %604 = vmatpush1.xpose.msra.mxu0 %v594
        %605 = vmatprep.subr.mxu0 0.0
        %606 = vmatpush1.xpose.msra.mxu0 %v595
        %607 = vmatprep.subr.mxu0 0.0
        %608 = vmatpush1.xpose.msra.mxu0 %v596
        %609 = vmatprep.subr.mxu0 0.0
        %610 = vmatpush1.xpose.msra.mxu0 %v597
        %611 = vmatprep.subr.mxu0 0.0
        %612 = vmatpush1.xpose.msra.mxu0 0.0
        %613 = vmatprep.subr.mxu0 0.0
        %614 = vmatpush1.xpose.msra.mxu0 0.0
        %615 = vmatprep.subr.mxu0 0.0
        %616 = vmatpush1.xpose.msra.mxu0 0.0
        %617 = vmatprep.subr.mxu0 0.0
        %618 = vmatpush1.xpose.msra.mxu0 0.0
        %619 = vmatprep.subr.mxu0 0.0
        %620 = vmatpush1.xpose.msra.mxu0 0.0
        %621 = vmatprep.subr.mxu0 0.0
        %622 = vmatpush1.xpose.msra.mxu0 0.0
        %623 = vmatprep.subr.mxu0 0.0
        %624 = vmatpush1.xpose.msra.mxu0 0.0
        %625 = vmatprep.subr.mxu0 0.0
        %626 = vmatpush1.xpose.msra.mxu0 0.0
        %627 = vmatprep.subr.mxu0 0.0
        %628 = vmatpush1.xpose.msra.mxu0 0.0
        %629 = vmatprep.subr.mxu0 0.0
        %630 = vmatpush1.xpose.msra.mxu0 0.0
        %631 = vmatprep.subr.mxu0 0.0
        %632 = vmatpush1.xpose.msra.mxu0 0.0
        %633 = vmatprep.subr.mxu0 0.0
        %634 = vmatpush1.xpose.msra.mxu0 0.0
        %635 = vmatprep.subr.mxu0 0.0
        %636 = vmatpush1.xpose.msra.mxu0 0.0
        %637 = vmatprep.subr.mxu0 0.0
        %638 = vmatpush1.xpose.msra.mxu0 0.0
        %639 = vmatprep.subr.mxu0 0.0
        %640 = vmatpush1.xpose.msra.mxu0 0.0
        %641 = vmatprep.subr.mxu0 0.0
        %642 = vmatpush1.xpose.msra.mxu0 0.0
        %643 = vmatprep.subr.mxu0 0.0
        %644 = vmatpush1.xpose.msra.mxu0 0.0
        %645 = vmatprep.subr.mxu0 0.0
        %646 = vmatpush1.xpose.msra.mxu0 0.0
        %647 = vmatprep.subr.mxu0 0.0
        %648 = vmatpush1.xpose.msra.mxu0 0.0
        %649 = vmatprep.subr.mxu0 0.0
        %650 = vmatpush1.xpose.msra.mxu0 0.0
        %651 = vmatprep.subr.mxu0 0.0
        %652 = vmatpush1.xpose.msra.mxu0 0.0
        %653 = vmatprep.subr.mxu0 0.0
        %654 = vmatpush1.xpose.msra.mxu0 0.0
        %655 = vmatprep.subr.mxu0 0.0
        %656 = vmatpush1.xpose.msra.mxu0 0.0
        %657 = vmatprep.subr.mxu0 0.0
        %658 = vmatpush1.xpose.msra.mxu0 0.0
        %659 = vmatprep.subr.mxu0 0.0
        %660 = vmatpush1.xpose.msra.mxu0 0.0
        %661 = vmatprep.subr.mxu0 0.0
        %662 = vmatpush1.xpose.msra.mxu0 0.0
        %663 = vmatprep.subr.mxu0 0.0
        %664 = vmatpush1.xpose.msra.mxu0 0.0
        %665 = vmatprep.subr.mxu0 0.0
        %666 = vmatpush1.xpose.msra.mxu0 0.0
        %667 = vmatprep.mubr.f32.mxu0 0.0
        %668 = vmatmul.mubr.f32.gmra.mrb[0].mxu0 %v236
        %v669 = vpop.f32.mrb[0].mxu0
        %v670 = vadd.f32 %v602, %v669
        %v671 = vpop.f32.mrb[0].mxu0
        %672 = vmatprep.mubr.f32.mxu0 0.0
        %673 = vmatmul.mubr.f32.gmra.mrb[0].mxu0 %v237
        %v674 = vpop.f32.mrb[0].mxu0
        %v675 = vadd.f32 %v602, %v674
        %v676 = vpop.f32.mrb[0].mxu0
        %677 = vmatprep.mubr.f32.mxu0 0.0
        %678 = vmatmul.mubr.f32.gmra.mrb[0].mxu0 %v238
        %v679 = vpop.f32.mrb[0].mxu0
        %v680 = vadd.f32 %v602, %v679
        %v681 = vpop.f32.mrb[0].mxu0
        %682 = vmatprep.mubr.f32.mxu0 0.0
        %683 = vmatmul.mubr.f32.gmra.mrb[0].mxu0 %v239
        %v684 = vpop.f32.mrb[0].mxu0
        %v685 = vadd.f32 %v602, %v684
        %v686 = vpop.f32.mrb[0].mxu0
        %687 = vmatprep.mubr.f32.mxu0 0.0
        %688 = vmatmul.mubr.f32.gmra.mrb[0].mxu0 %v240
        %v689 = vpop.f32.mrb[0].mxu0
        %v690 = vadd.f32 %v602, %v689
        %v691 = vpop.f32.mrb[0].mxu0
        %692 = vmatprep.mubr.f32.mxu0 0.0
        %693 = vmatmul.mubr.f32.gmra.mrb[0].mxu0 %v241
        %v694 = vpop.f32.mrb[0].mxu0
        %v695 = vadd.f32 %v602, %v694
        %v696 = vpop.f32.mrb[0].mxu0
        %697 = vmatprep.mubr.f32.mxu0 0.0
        %698 = vmatmul.mubr.f32.gmra.mrb[0].mxu0 %v242
        %v699 = vpop.f32.mrb[0].mxu0
        %v700 = vadd.f32 %v602, %v699
        %v701 = vpop.f32.mrb[0].mxu0
        %702 = vmatprep.mubr.f32.mxu0 0.0
        %703 = vmatmul.mubr.f32.gmra.mrb[0].mxu0 %v243
        %v704 = vpop.f32.mrb[0].mxu0
        %v705 = vadd.f32 %v602, %v704
        %v706 = vpop.f32.mrb[0].mxu0
        %707 = vmatprep.mubr.f32.mxu0 0.0
        %708 = vmatmul.mubr.f32.gmra.mrb[0].mxu0 %v244
        %v709 = vpop.f32.mrb[0].mxu0
        %v710 = vadd.f32 %v602, %v709
        %v711 = vpop.f32.mrb[0].mxu0
        %712 = vmatprep.mubr.f32.mxu0 0.0
        %713 = vmatmul.mubr.f32.gmra.mrb[0].mxu0 %v245
        %v714 = vpop.f32.mrb[0].mxu0
        %v715 = vadd.f32 %v602, %v714
        %v716 = vpop.f32.mrb[0].mxu0
        %717 = vmatprep.mubr.f32.mxu0 0.0
        %718 = vmatmul.mubr.f32.gmra.mrb[0].mxu0 %v246
        %v719 = vpop.f32.mrb[0].mxu0
        %v720 = vadd.f32 %v602, %v719
        %v721 = vpop.f32.mrb[0].mxu0
        %722 = vmatprep.mubr.f32.mxu0 0.0
        %723 = vmatmul.mubr.f32.gmra.mrb[0].mxu0 %v247
        %v724 = vpop.f32.mrb[0].mxu0
        %v725 = vadd.f32 %v602, %v724
        %v726 = vpop.f32.mrb[0].mxu0
        %727 = vmatprep.mubr.f32.mxu0 0.0
        %728 = vmatmul.mubr.f32.gmra.mrb[0].mxu0 %v248
        %v729 = vpop.f32.mrb[0].mxu0
        %v730 = vadd.f32 %v602, %v729
        %v731 = vpop.f32.mrb[0].mxu0
        %732 = vmatprep.mubr.f32.mxu0 0.0
        %733 = vmatmul.mubr.f32.gmra.mrb[0].mxu0 %v249
        %v734 = vpop.f32.mrb[0].mxu0
        %v735 = vadd.f32 %v602, %v734
        %v736 = vpop.f32.mrb[0].mxu0
        %737 = vmatprep.mubr.f32.mxu0 0.0
        %738 = vmatmul.mubr.f32.gmra.mrb[0].mxu0 %v250
        %v739 = vpop.f32.mrb[0].mxu0
        %v740 = vadd.f32 %v602, %v739
        %v741 = vpop.f32.mrb[0].mxu0
        %742 = vmatprep.mubr.f32.mxu0 0.0
        %743 = vmatmul.mubr.f32.gmra.mrb[0].mxu0 %v251
        %v744 = vpop.f32.mrb[0].mxu0
        %v745 = vadd.f32 %v602, %v744
        %v746 = vpop.f32.mrb[0].mxu0
        %747 = vdwg.mxu0
        %s748 = scalar_lea.vmem %s233, 256 [#allocation8]
        %749 = vst.msk [vmem:[%s748] sm:$0xff] %vm406, %v670
        %750 = vst.msk [vmem:[%s748 + $0x8] sm:$0xff] %vm406, %v675
        %751 = vst.msk [vmem:[%s748 + $0x10] sm:$0xff] %vm406, %v680
        %752 = vst.msk [vmem:[%s748 + $0x18] sm:$0xff] %vm406, %v685
        %753 = vst.msk [vmem:[%s748 + $0x20] sm:$0xff] %vm406, %v690
        %754 = vst.msk [vmem:[%s748 + $0x28] sm:$0xff] %vm406, %v695
        %755 = vst.msk [vmem:[%s748 + $0x30] sm:$0xff] %vm406, %v700
        %756 = vst.msk [vmem:[%s748 + $0x38] sm:$0xff] %vm406, %v705
        %757 = vst.msk [vmem:[%s748 + $0x40] sm:$0xff] %vm406, %v710
        %758 = vst.msk [vmem:[%s748 + $0x48] sm:$0xff] %vm406, %v715
        %759 = vst.msk [vmem:[%s748 + $0x50] sm:$0xff] %vm406, %v720
        %760 = vst.msk [vmem:[%s748 + $0x58] sm:$0xff] %vm406, %v725
        %761 = vst.msk [vmem:[%s748 + $0x60] sm:$0xff] %vm406, %v730
        %762 = vst.msk [vmem:[%s748 + $0x68] sm:$0xff] %vm406, %v735
        %763 = vst.msk [vmem:[%s748 + $0x70] sm:$0xff] %vm406, %v740
        %764 = vst.msk [vmem:[%s748 + $0x78] sm:$0xff] %vm406, %v745
        %v765 = vld [vmem:[#allocation5 + $0x60] sm:$0xff]
        %v766 = vld [vmem:[#allocation5 + $0x68] sm:$0xff]
        %v767 = vld [vmem:[#allocation5 + $0x70] sm:$0xff]
        %v768 = vld [vmem:[#allocation5 + $0x78] sm:$0xff]
        %v769 = vld [vmem:[#allocation7 + $0x3] sm:$0x1]
        %v770 = vlaneseq
        %v771 = vshrl.u32 %v770, 7
        %v772 = vsub.s32 0, %v771
        %v773 = vrot.slane %v769, %v772
        %774 = vmatprep.subr.mxu0 0.0
        %775 = vmatpush1.xpose.msra.mxu0 %v765
        %776 = vmatprep.subr.mxu0 0.0
        %777 = vmatpush1.xpose.msra.mxu0 %v766
        %778 = vmatprep.subr.mxu0 0.0
        %779 = vmatpush1.xpose.msra.mxu0 %v767
        %780 = vmatprep.subr.mxu0 0.0
        %781 = vmatpush1.xpose.msra.mxu0 %v768
        %782 = vmatprep.subr.mxu0 0.0
        %783 = vmatpush1.xpose.msra.mxu0 0.0
        %784 = vmatprep.subr.mxu0 0.0
        %785 = vmatpush1.xpose.msra.mxu0 0.0
        %786 = vmatprep.subr.mxu0 0.0
        %787 = vmatpush1.xpose.msra.mxu0 0.0
        %788 = vmatprep.subr.mxu0 0.0
        %789 = vmatpush1.xpose.msra.mxu0 0.0
        %790 = vmatprep.subr.mxu0 0.0
        %791 = vmatpush1.xpose.msra.mxu0 0.0
        %792 = vmatprep.subr.mxu0 0.0
        %793 = vmatpush1.xpose.msra.mxu0 0.0
        %794 = vmatprep.subr.mxu0 0.0
        %795 = vmatpush1.xpose.msra.mxu0 0.0
        %796 = vmatprep.subr.mxu0 0.0
        %797 = vmatpush1.xpose.msra.mxu0 0.0
        %798 = vmatprep.subr.mxu0 0.0
        %799 = vmatpush1.xpose.msra.mxu0 0.0
        %800 = vmatprep.subr.mxu0 0.0
        %801 = vmatpush1.xpose.msra.mxu0 0.0
        %802 = vmatprep.subr.mxu0 0.0
        %803 = vmatpush1.xpose.msra.mxu0 0.0
        %804 = vmatprep.subr.mxu0 0.0
        %805 = vmatpush1.xpose.msra.mxu0 0.0
        %806 = vmatprep.subr.mxu0 0.0
        %807 = vmatpush1.xpose.msra.mxu0 0.0
        %808 = vmatprep.subr.mxu0 0.0
        %809 = vmatpush1.xpose.msra.mxu0 0.0
        %810 = vmatprep.subr.mxu0 0.0
        %811 = vmatpush1.xpose.msra.mxu0 0.0
        %812 = vmatprep.subr.mxu0 0.0
        %813 = vmatpush1.xpose.msra.mxu0 0.0
        %814 = vmatprep.subr.mxu0 0.0
        %815 = vmatpush1.xpose.msra.mxu0 0.0
        %816 = vmatprep.subr.mxu0 0.0
        %817 = vmatpush1.xpose.msra.mxu0 0.0
        %818 = vmatprep.subr.mxu0 0.0
        %819 = vmatpush1.xpose.msra.mxu0 0.0
        %820 = vmatprep.subr.mxu0 0.0
        %821 = vmatpush1.xpose.msra.mxu0 0.0
        %822 = vmatprep.subr.mxu0 0.0
        %823 = vmatpush1.xpose.msra.mxu0 0.0
        %824 = vmatprep.subr.mxu0 0.0
        %825 = vmatpush1.xpose.msra.mxu0 0.0
        %826 = vmatprep.subr.mxu0 0.0
        %827 = vmatpush1.xpose.msra.mxu0 0.0
        %828 = vmatprep.subr.mxu0 0.0
        %829 = vmatpush1.xpose.msra.mxu0 0.0
        %830 = vmatprep.subr.mxu0 0.0
        %831 = vmatpush1.xpose.msra.mxu0 0.0
        %832 = vmatprep.subr.mxu0 0.0
        %833 = vmatpush1.xpose.msra.mxu0 0.0
        %834 = vmatprep.subr.mxu0 0.0
        %835 = vmatpush1.xpose.msra.mxu0 0.0
        %836 = vmatprep.subr.mxu0 0.0
        %837 = vmatpush1.xpose.msra.mxu0 0.0
        %838 = vmatprep.mubr.f32.mxu0 0.0
        %839 = vmatmul.mubr.f32.gmra.mrb[0].mxu0 %v236
        %v840 = vpop.f32.mrb[0].mxu0
        %v841 = vadd.f32 %v773, %v840
        %v842 = vpop.f32.mrb[0].mxu0
        %843 = vmatprep.mubr.f32.mxu0 0.0
        %844 = vmatmul.mubr.f32.gmra.mrb[0].mxu0 %v237
        %v845 = vpop.f32.mrb[0].mxu0
        %v846 = vadd.f32 %v773, %v845
        %v847 = vpop.f32.mrb[0].mxu0
        %848 = vmatprep.mubr.f32.mxu0 0.0
        %849 = vmatmul.mubr.f32.gmra.mrb[0].mxu0 %v238
        %v850 = vpop.f32.mrb[0].mxu0
        %v851 = vadd.f32 %v773, %v850
        %v852 = vpop.f32.mrb[0].mxu0
        %853 = vmatprep.mubr.f32.mxu0 0.0
        %854 = vmatmul.mubr.f32.gmra.mrb[0].mxu0 %v239
        %v855 = vpop.f32.mrb[0].mxu0
        %v856 = vadd.f32 %v773, %v855
        %v857 = vpop.f32.mrb[0].mxu0
        %858 = vmatprep.mubr.f32.mxu0 0.0
        %859 = vmatmul.mubr.f32.gmra.mrb[0].mxu0 %v240
        %v860 = vpop.f32.mrb[0].mxu0
        %v861 = vadd.f32 %v773, %v860
        %v862 = vpop.f32.mrb[0].mxu0
        %863 = vmatprep.mubr.f32.mxu0 0.0
        %864 = vmatmul.mubr.f32.gmra.mrb[0].mxu0 %v241
        %v865 = vpop.f32.mrb[0].mxu0
        %v866 = vadd.f32 %v773, %v865
        %v867 = vpop.f32.mrb[0].mxu0
        %868 = vmatprep.mubr.f32.mxu0 0.0
        %869 = vmatmul.mubr.f32.gmra.mrb[0].mxu0 %v242
        %v870 = vpop.f32.mrb[0].mxu0
        %v871 = vadd.f32 %v773, %v870
        %v872 = vpop.f32.mrb[0].mxu0
        %873 = vmatprep.mubr.f32.mxu0 0.0
        %874 = vmatmul.mubr.f32.gmra.mrb[0].mxu0 %v243
        %v875 = vpop.f32.mrb[0].mxu0
        %v876 = vadd.f32 %v773, %v875
        %v877 = vpop.f32.mrb[0].mxu0
        %878 = vmatprep.mubr.f32.mxu0 0.0
        %879 = vmatmul.mubr.f32.gmra.mrb[0].mxu0 %v244
        %v880 = vpop.f32.mrb[0].mxu0
        %v881 = vadd.f32 %v773, %v880
        %v882 = vpop.f32.mrb[0].mxu0
        %883 = vmatprep.mubr.f32.mxu0 0.0
        %884 = vmatmul.mubr.f32.gmra.mrb[0].mxu0 %v245
        %v885 = vpop.f32.mrb[0].mxu0
        %v886 = vadd.f32 %v773, %v885
        %v887 = vpop.f32.mrb[0].mxu0
        %888 = vmatprep.mubr.f32.mxu0 0.0
        %889 = vmatmul.mubr.f32.gmra.mrb[0].mxu0 %v246
        %v890 = vpop.f32.mrb[0].mxu0
        %v891 = vadd.f32 %v773, %v890
        %v892 = vpop.f32.mrb[0].mxu0
        %893 = vmatprep.mubr.f32.mxu0 0.0
        %894 = vmatmul.mubr.f32.gmra.mrb[0].mxu0 %v247
        %v895 = vpop.f32.mrb[0].mxu0
        %v896 = vadd.f32 %v773, %v895
        %v897 = vpop.f32.mrb[0].mxu0
        %898 = vmatprep.mubr.f32.mxu0 0.0
        %899 = vmatmul.mubr.f32.gmra.mrb[0].mxu0 %v248
        %v900 = vpop.f32.mrb[0].mxu0
        %v901 = vadd.f32 %v773, %v900
        %v902 = vpop.f32.mrb[0].mxu0
        %903 = vmatprep.mubr.f32.mxu0 0.0
        %904 = vmatmul.mubr.f32.gmra.mrb[0].mxu0 %v249
        %v905 = vpop.f32.mrb[0].mxu0
        %v906 = vadd.f32 %v773, %v905
        %v907 = vpop.f32.mrb[0].mxu0
        %908 = vmatprep.mubr.f32.mxu0 0.0
        %909 = vmatmul.mubr.f32.gmra.mrb[0].mxu0 %v250
        %v910 = vpop.f32.mrb[0].mxu0
        %v911 = vadd.f32 %v773, %v910
        %v912 = vpop.f32.mrb[0].mxu0
        %913 = vmatprep.mubr.f32.mxu0 0.0
        %914 = vmatmul.mubr.f32.gmra.mrb[0].mxu0 %v251
        %v915 = vpop.f32.mrb[0].mxu0
        %v916 = vadd.f32 %v773, %v915
        %v917 = vpop.f32.mrb[0].mxu0
        %918 = vdwg.mxu0
        %s919 = scalar_lea.vmem %s233, 384 [#allocation8]
        %920 = vst.msk [vmem:[%s919] sm:$0xff] %vm406, %v841
        %921 = vst.msk [vmem:[%s919 + $0x8] sm:$0xff] %vm406, %v846
        %922 = vst.msk [vmem:[%s919 + $0x10] sm:$0xff] %vm406, %v851
        %923 = vst.msk [vmem:[%s919 + $0x18] sm:$0xff] %vm406, %v856
        %924 = vst.msk [vmem:[%s919 + $0x20] sm:$0xff] %vm406, %v861
        %925 = vst.msk [vmem:[%s919 + $0x28] sm:$0xff] %vm406, %v866
        %926 = vst.msk [vmem:[%s919 + $0x30] sm:$0xff] %vm406, %v871
        %927 = vst.msk [vmem:[%s919 + $0x38] sm:$0xff] %vm406, %v876
        %928 = vst.msk [vmem:[%s919 + $0x40] sm:$0xff] %vm406, %v881
        %929 = vst.msk [vmem:[%s919 + $0x48] sm:$0xff] %vm406, %v886
        %930 = vst.msk [vmem:[%s919 + $0x50] sm:$0xff] %vm406, %v891
        %931 = vst.msk [vmem:[%s919 + $0x58] sm:$0xff] %vm406, %v896
        %932 = vst.msk [vmem:[%s919 + $0x60] sm:$0xff] %vm406, %v901
        %933 = vst.msk [vmem:[%s919 + $0x68] sm:$0xff] %vm406, %v906
        %934 = vst.msk [vmem:[%s919 + $0x70] sm:$0xff] %vm406, %v911
        %935 = vst.msk [vmem:[%s919 + $0x78] sm:$0xff] %vm406, %v916
        %s936 = sand.u32 %s113, 1
        %s937 = scalar_lea.sflag [#allocation4], %s936
        %s938 = sand.u32 %s113, 1
        %s939 = smul.addr %s938, 512
        %s940 = scalar_lea.vmem [#allocation8], %s939
        // Predicated region
        $region45: #{tpu_custom_call.1} parent=31 // pred_check
          %p941 = pneg %p123
        $region46: #{tpu_custom_call.1} parent=31 // pred_check_branch
          %943 = sbr.rel (%p941) target = $region48
        $region47: #{tpu_custom_call.1} parent=31 // pred_region
          %s944 = smul.u32 16, %s26
          %s946 = ssub.s32 8192, 8192
          %947 = vsyncadd %s937, %s946
          %s948 = smul.addr %s25, 64
          %s949 = sadd.s32 %s944, %s948
          %s950 = smul.addr %s949, 128
          %s951 = scalar_lea.hbm %s3, %s950
          %s952 = sshll.u32 %s940, 4
          %s953 = int_to_ptr.vmem [resolvable:$true] %s952
          %958 = dma.vmem_to_hbm [thread:$0]  %s953, 8192, %s951, %s937, 128, 128, 8
        $region48: #{tpu_custom_call.1} parent=31 // pred_fallthru
          _
      $region32: #{tpu_custom_call.1} parent=5 // pred_fallthru
        _
      %p959 = scmp.le.s32.totalorder 2, %s16
      // Predicated region
      $region49: #{tpu_custom_call.1} parent=5 // pred_check
        %p960 = pneg %p959
      $region50: #{tpu_custom_call.1} parent=5 // pred_check_branch
        %962 = sbr.rel (%p960) target = $region52
      $region51: #{tpu_custom_call.1} parent=5 // pred_region
        %s963 = ssub.s32 %s16, 2
        // Predicated region
        $region53: #{tpu_custom_call.1} parent=51 // pred_check
          %p964 = pneg %p129
        $region54: #{tpu_custom_call.1} parent=51 // pred_check_branch
          %966 = sbr.rel (%p964) target = $region56
        $region55: #{tpu_custom_call.1} parent=51 // pred_region
          %s967 = sand.u32 %s114, 1
          %s968 = scalar_lea.sflag [#allocation4], %s967
          %s969 = sand.u32 %s114, 1
          %s970 = smul.addr %s969, 512
          %s971 = scalar_lea.vmem [#allocation8], %s970
          %972 = dma.done %s968, 8192
        $region56: #{tpu_custom_call.1} parent=51 // pred_fallthru
          _
      $region52: #{tpu_custom_call.1} parent=5 // pred_fallthru
        _
    $region6: #{tpu_custom_call.1} parent=1 // loop_footer
      %s20 = sadd.s32 1, %s16
    $region7: #{tpu_custom_call.1} parent=1 // loop_footer_branch
      %15 = sbr.rel target = $region3
    $region8: #{tpu_custom_call.1} parent=1 // loop_exit
      _
    %973 = vsyncpa [#allocation3], 1
    %s974 = scalar_lea.sflag [#allocation3], 1
    %975 = vsyncpa %s974, 1
    %976 = vsyncpa [#allocation6], 1
    %977 = vsyncpa [#allocation4], 1
    %s978 = scalar_lea.sflag [#allocation4], 1
    %979 = vsyncpa %s978, 1

</llo_original>
